<compile_context>
chip_gen: v5e
topology: v5e:2x2
jax: 0.10.0
libtpu: 0.0.40
codegen_flags: <defaults>
</compile_context>

<pallas_src>
import functools

import jax
import jax.numpy as jnp
from jax.experimental import pallas as pl
from jax.experimental.pallas import tpu as pltpu


def _round_up(x, m):
    return (x + m - 1) // m * m


# ----------------------------------------------------------------------------
# Fused kernel: one (TM-rows x full-MLP) pass for ensemble member `e`,
# accumulating sum / sum^2 of the logits into the output refs.
# ----------------------------------------------------------------------------
def _rse_fused_kernel(*args, n_layers, stds, scale, shift):
    """args = (x_ref, noise_0..L-1, w_0..L-1, b_0..L-1, sum_ref, sq_ref)."""
    x_ref = args[0]
    noise_refs = args[1:1 + n_layers]
    w_refs = args[1 + n_layers:1 + 2 * n_layers]
    b_refs = args[1 + 2 * n_layers:1 + 3 * n_layers]
    sum_ref = args[1 + 3 * n_layers]
    sq_ref = args[2 + 3 * n_layers]

    e = pl.program_id(1)                       # ensemble axis (reduction, last)

    @pl.when(e == 0)
    def _():                                   # init accumulators once per block
        sum_ref[...] = jnp.zeros_like(sum_ref)
        sq_ref[...] = jnp.zeros_like(sq_ref)

    # Normalization (x - mean) / sigma folded into a single multiply-add.
    h = x_ref[...] * scale + shift

    # Static unroll over layers (per-layer shapes differ; gives the scheduler
    # full visibility so layer i+1 work can hide under layer i's matmul).
    for i in range(n_layers):
        # Noise layer: h += N(0, std_i). noise_refs[i] block is (1, TM, dim).
        h = h + stds[i] * noise_refs[i][0]
        # Linear: MXU matmul in bf16 with f32 accumulation, then f32 bias.
        h = jnp.dot(h.astype(jnp.bfloat16), w_refs[i][...],
                    preferred_element_type=jnp.float32)
        h = h + b_refs[i][...]
        if i < n_layers - 1:
            h = jnp.maximum(h, 0.0)            # ReLU on hidden layers only.

    # Fold the ensemble reduction into the kernel (lane-dense 128-wide store).
    sum_ref[...] += h
    sq_ref[...] += h * h


def _rse_pallas_call(x_pad, noises, ws, bs, *, n, n_layers, stds, scale, shift,
                     b_pad, tm, d_in_pad, out_pad, dims_pad):
    kernel = functools.partial(_rse_fused_kernel, n_layers=n_layers,
                               stds=stds, scale=scale, shift=shift)
    mb = b_pad // tm
    grid = (mb, n)                             # reduction (ensemble) axis last

    in_specs = [
        # x: blocked over batch rows, index_map ignores the ensemble index ->
        # same block reused across all n passes (no re-DMA, no replication).
        pl.BlockSpec((tm, d_in_pad), lambda b, e: (b, 0)),
    ]
    # Per-layer noise: (n, B_pad, dim_pad) arrays, one (1, TM, dim) block/step.
    for dim in dims_pad:
        in_specs.append(pl.BlockSpec((1, tm, dim), lambda b, e: (e, b, 0)))
    # Weights / biases: constant index_map -> resident in VMEM.
    for w in ws:
        in_specs.append(pl.BlockSpec(w.shape, lambda b, e: (0, 0)))
    for bias in bs:
        in_specs.append(pl.BlockSpec(bias.shape, lambda b, e: (0, 0)))

    out_specs = (
        pl.BlockSpec((tm, out_pad), lambda b, e: (b, 0)),   # sum of logits
        pl.BlockSpec((tm, out_pad), lambda b, e: (b, 0)),   # sum of logits^2
    )
    out_shape = (jax.ShapeDtypeStruct((b_pad, out_pad), jnp.float32),
                 jax.ShapeDtypeStruct((b_pad, out_pad), jnp.float32))

    return pl.pallas_call(
        kernel,
        grid=grid,
        out_shape=out_shape,
        in_specs=in_specs,
        out_specs=out_specs,
        compiler_params=pltpu.CompilerParams(
            dimension_semantics=("parallel", "arbitrary")),
    )(x_pad, *noises, *ws, *bs)


# ----------------------------------------------------------------------------
# Jitted forward: pad + noise generation + fused kernel + mean/std from the
# in-kernel sum / sum-of-squares.
# ----------------------------------------------------------------------------
@functools.partial(jax.jit, static_argnames=(
    "n", "return_std", "n_layers", "d_in", "d_in_pad", "num_classes",
    "out_pad", "dims_pad", "stds", "scale", "shift"))
def _rse_forward(x, key, ws, bs, *, n, return_std, n_layers, d_in, d_in_pad,
                 num_classes, out_pad, dims_pad, stds, scale, shift):
    B = x.shape[0]
    # Row-block size: large enough to fill MXU sublanes at real batch sizes,
    # capped so tiny demo batches still satisfy the (8, 128) tiling rule.
    tm = min(256, _round_up(B, 8))
    b_pad = _round_up(B, tm)

    x_flat = x.reshape(B, -1).astype(jnp.float32)
    x_flat = jnp.pad(x_flat, ((0, b_pad - B), (0, d_in_pad - d_in)))

    # Per-layer, per-ensemble-member Gaussian noise (scaled by std in-kernel).
    keys = jax.random.split(key, n_layers)
    noises = tuple(
        jax.random.normal(keys[i], (n, b_pad, dims_pad[i]), jnp.float32)
        for i in range(n_layers))

    s, sq = _rse_pallas_call(
        x_flat, noises, ws, bs, n=n, n_layers=n_layers, stds=stds,
        scale=scale, shift=shift, b_pad=b_pad, tm=tm, d_in_pad=d_in_pad,
        out_pad=out_pad, dims_pad=dims_pad)

    s = s[:B, :num_classes]
    sq = sq[:B, :num_classes]
    mean = s / n
    if return_std:
        # torch.std default is the unbiased estimator (ddof=1); n == 1 would
        # give NaN there — we clamp the denominator to 1 instead (documented).
        denom = max(n - 1, 1)
        var = jnp.maximum(sq - n * mean * mean, 0.0) / denom
        return mean, jnp.sqrt(var)
    return mean


# ----------------------------------------------------------------------------
# FullyConnectedRandomSelfEnsemble in JAX, driving the fused Pallas kernel.
# ----------------------------------------------------------------------------
class FullyConnectedRandomSelfEnsemble:
    def __init__(self, key, input_size, fc_layers, std_init, std_inner,
                 data_mean, data_std):
        self.input_size = input_size
        self.fc_layers = list(fc_layers)
        self.num_classes = self.fc_layers[-1]
        # Normalization fused into a multiply-add: (x - mean)/sigma.
        self.scale = 1.0 / float(data_std)
        self.shift = -float(data_mean) / float(data_std)
        # Noise stds per layer: std_init on layer 0, std_inner on the rest
        # (the last layer has noise but no ReLU, matching the torch module).
        self.stds = tuple([float(std_init)] +
                          [float(std_inner)] * (len(self.fc_layers) - 1))

        d_in = input_size ** 2
        self.d_in = d_in
        self.d_in_pad = _round_up(d_in, 128)

        # Deterministic init mimicking torch.nn.Linear.reset_parameters:
        # U(-1/sqrt(fan_in), 1/sqrt(fan_in)) for both weight and bias.
        # Zero-padding rows/cols/bias keeps padded lanes exactly inert.
        # Weights stored bf16 (MXU-native); biases stay f32.
        self.ws, self.bs, dims_pad = [], [], []
        prev, prev_pad = d_in, self.d_in_pad
        for fc in self.fc_layers:
            key, wk, bk = jax.random.split(key, 3)
            bound = 1.0 / float(prev) ** 0.5
            fc_pad = _round_up(fc, 128)
            dims_pad.append(prev_pad)
            w = jax.random.uniform(wk, (prev, fc), jnp.float32, -bound, bound)
            b = jax.random.uniform(bk, (1, fc), jnp.float32, -bound, bound)
            self.ws.append(
                jnp.pad(w, ((0, prev_pad - prev), (0, fc_pad - fc)))
                .astype(jnp.bfloat16))
            self.bs.append(jnp.pad(b, ((0, 0), (0, fc_pad - fc))))
            prev, prev_pad = fc, fc_pad
        self.ws = tuple(self.ws)
        self.bs = tuple(self.bs)
        self.dims_pad = tuple(dims_pad)   # per-layer padded input widths
        self.out_pad = prev_pad

    def __call__(self, x, key, n=1, return_std=False):
        # TODO(synk): torch's Noise uses a stateful torch RNG; here the noise
        # comes from jax.random (same distribution, different bits).
        return _rse_forward(
            x, key, self.ws, self.bs, n=int(n), return_std=bool(return_std),
            n_layers=len(self.fc_layers), d_in=self.d_in,
            d_in_pad=self.d_in_pad, num_classes=self.num_classes,
            out_pad=self.out_pad, dims_pad=self.dims_pad, stds=self.stds,
            scale=self.scale, shift=self.shift)


if __name__ == "__main__":
    key = jax.random.PRNGKey(0)
    k_params, k_data, k_noise = jax.random.split(key, 3)

    input_size = 16                      # 16x16 single-channel "images"
    fc_layers = [32, 32, 10]             # two hidden layers + 10-class output
    model = FullyConnectedRandomSelfEnsemble(
        k_params,
        input_size=input_size,
        fc_layers=fc_layers,
        std_init=0.1,
        std_inner=0.05,
        data_mean=0.1307,
        data_std=0.3081,
    )

    x = jax.random.uniform(k_data, (2, 1, input_size, input_size), jnp.float32)

    mean_out, std_out = model(x, k_noise, n=4, return_std=True)
    mean_out = jax.block_until_ready(mean_out)
    std_out = jax.block_until_ready(std_out)

    assert mean_out.shape == (2, fc_layers[-1])
    assert std_out.shape == (2, fc_layers[-1])
    assert bool(jnp.all(jnp.isfinite(mean_out)))
    assert bool(jnp.all(jnp.isfinite(std_out)))
    assert bool(jnp.all(std_out >= 0.0))

    # mean-only path (n=1) must also run.
    mean_only = jax.block_until_ready(model(x, k_noise, n=1, return_std=False))
    assert mean_only.shape == (2, fc_layers[-1])
    assert bool(jnp.all(jnp.isfinite(mean_only)))

    print("KERNEL_OK")
</pallas_src>

<mosaic_0001>
module attributes {stable_mosaic.version = 11 : i64} {
  func.func @_rse_fused_kernel(%arg0: i32, %arg1: i32, %arg2: memref<8x256xf32, #tpu.memory_space<vmem>>, %arg3: memref<1x8x256xf32, #tpu.memory_space<vmem>>, %arg4: memref<1x8x128xf32, #tpu.memory_space<vmem>>, %arg5: memref<1x8x128xf32, #tpu.memory_space<vmem>>, %arg6: memref<256x128xbf16, #tpu.memory_space<vmem>>, %arg7: memref<128x128xbf16, #tpu.memory_space<vmem>>, %arg8: memref<128x128xbf16, #tpu.memory_space<vmem>>, %arg9: memref<1x128xf32, #tpu.memory_space<vmem>>, %arg10: memref<1x128xf32, #tpu.memory_space<vmem>>, %arg11: memref<1x128xf32, #tpu.memory_space<vmem>>, %arg12: memref<8x128xf32, #tpu.memory_space<vmem>>, %arg13: memref<8x128xf32, #tpu.memory_space<vmem>>) attributes {dimension_semantics = [#tpu.dimension_semantics<parallel>, #tpu.dimension_semantics<arbitrary>], iteration_bounds = array<i64: 1, 4>, scalar_prefetch = 0 : i64, scratch_operands = 0 : i64, tpu.core_type = #tpu.core_type<tc>, window_params = [{transform_indices = @transform_0, window_bounds = array<i64: 8, 256>}, {transform_indices = @transform_1, window_bounds = array<i64: 1, 8, 256>}, {transform_indices = @transform_2, window_bounds = array<i64: 1, 8, 128>}, {transform_indices = @transform_3, window_bounds = array<i64: 1, 8, 128>}, {pipeline_mode = #tpu.pipeline_mode<synchronous>, transform_indices = @transform_4, window_bounds = array<i64: 256, 128>}, {pipeline_mode = #tpu.pipeline_mode<synchronous>, transform_indices = @transform_5, window_bounds = array<i64: 128, 128>}, {pipeline_mode = #tpu.pipeline_mode<synchronous>, transform_indices = @transform_6, window_bounds = array<i64: 128, 128>}, {pipeline_mode = #tpu.pipeline_mode<synchronous>, transform_indices = @transform_7, window_bounds = array<i64: 1, 128>}, {pipeline_mode = #tpu.pipeline_mode<synchronous>, transform_indices = @transform_8, window_bounds = array<i64: 1, 128>}, {pipeline_mode = #tpu.pipeline_mode<synchronous>, transform_indices = @transform_9, window_bounds = array<i64: 1, 128>}, {transform_indices = @transform_10, window_bounds = array<i64: 8, 128>}, {transform_indices = @transform_11, window_bounds = array<i64: 8, 128>}]} {
    %c0_i32 = arith.constant 0 : i32
    %0 = arith.cmpi eq, %arg1, %c0_i32 : i32
    %1 = arith.extui %0 : i1 to i32
    %c0_i32_0 = arith.constant 0 : i32
    %2 = arith.cmpi ne, %1, %c0_i32_0 : i32
    scf.if %2 {
      %cst_40 = arith.constant 0.000000e+00 : f32
      %52 = vector.broadcast %cst_40 : f32 to vector<8x128xf32>
      %c0_41 = arith.constant 0 : index
      %c0_42 = arith.constant 0 : index
      %53 = vector.load %arg12[%c0_41, %c0_42] : memref<8x128xf32, #tpu.memory_space<vmem>>, vector<8x128xf32>
      tpu.vector_store %arg12[%c0_41, %c0_42], %52 {strides = array<i32>} : memref<8x128xf32, #tpu.memory_space<vmem>>, vector<8x128xf32>,
      %cst_43 = arith.constant 0.000000e+00 : f32
      %54 = vector.broadcast %cst_43 : f32 to vector<8x128xf32>
      %c0_44 = arith.constant 0 : index
      %c0_45 = arith.constant 0 : index
      %55 = vector.load %arg13[%c0_44, %c0_45] : memref<8x128xf32, #tpu.memory_space<vmem>>, vector<8x128xf32>
      tpu.vector_store %arg13[%c0_44, %c0_45], %54 {strides = array<i32>} : memref<8x128xf32, #tpu.memory_space<vmem>>, vector<8x128xf32>,
    } else {
    }
    %c0 = arith.constant 0 : index
    %c0_1 = arith.constant 0 : index
    %3 = vector.load %arg2[%c0, %c0_1] : memref<8x256xf32, #tpu.memory_space<vmem>>, vector<8x256xf32>
    %cst = arith.constant 3.24569941 : f32
    %4 = vector.broadcast %cst : f32 to vector<8x256xf32>
    %5 = arith.mulf %3, %4 : vector<8x256xf32>
    %cst_2 = arith.constant -0.424212933 : f32
    %6 = vector.broadcast %cst_2 : f32 to vector<8x256xf32>
    %7 = arith.addf %5, %6 : vector<8x256xf32>
    %c0_3 = arith.constant 0 : index
    %c0_4 = arith.constant 0 : index
    %c0_5 = arith.constant 0 : index
    %8 = vector.load %arg3[%c0_3, %c0_4, %c0_5] : memref<1x8x256xf32, #tpu.memory_space<vmem>>, vector<1x8x256xf32>
    %9 = vector.shape_cast %8 : vector<1x8x256xf32> to vector<8x256xf32>
    %cst_6 = arith.constant 1.000000e-01 : f32
    %10 = vector.broadcast %cst_6 : f32 to vector<8x256xf32>
    %11 = arith.mulf %10, %9 : vector<8x256xf32>
    %12 = arith.addf %7, %11 : vector<8x256xf32>
    %13 = arith.truncf %12 : vector<8x256xf32> to vector<8x256xbf16>
    %c0_7 = arith.constant 0 : index
    %c0_8 = arith.constant 0 : index
    %14 = vector.load %arg6[%c0_7, %c0_8] : memref<256x128xbf16, #tpu.memory_space<vmem>>, vector<256x128xbf16>
    %cst_9 = arith.constant dense<0.000000e+00> : vector<8x128xf32>
    %15 = tpu.matmul %13, %14, %cst_9 {dimension_numbers = #tpu.dot_dimension_numbers<[1], [0], [0], [1], [0, 0, 1, 1], [], []>} : vector<8x256xbf16>, vector<256x128xbf16>, vector<8x128xf32> -> vector<8x128xf32>
    %c0_10 = arith.constant 0 : index
    %c0_11 = arith.constant 0 : index
    %16 = vector.load %arg9[%c0_10, %c0_11] : memref<1x128xf32, #tpu.memory_space<vmem>>, vector<1x128xf32>
    %17 = vector.broadcast %16 : vector<1x128xf32> to vector<8x128xf32>
    %18 = arith.addf %15, %17 : vector<8x128xf32>
    %cst_12 = arith.constant 0.000000e+00 : f32
    %19 = vector.broadcast %cst_12 : f32 to vector<8x128xf32>
    %20 = arith.maximumf %18, %19 : vector<8x128xf32>
    %c0_13 = arith.constant 0 : index
    %c0_14 = arith.constant 0 : index
    %c0_15 = arith.constant 0 : index
    %21 = vector.load %arg4[%c0_13, %c0_14, %c0_15] : memref<1x8x128xf32, #tpu.memory_space<vmem>>, vector<1x8x128xf32>
    %22 = vector.shape_cast %21 : vector<1x8x128xf32> to vector<8x128xf32>
    %cst_16 = arith.constant 5.000000e-02 : f32
    %23 = vector.broadcast %cst_16 : f32 to vector<8x128xf32>
    %24 = arith.mulf %23, %22 : vector<8x128xf32>
    %25 = arith.addf %20, %24 : vector<8x128xf32>
    %26 = arith.truncf %25 : vector<8x128xf32> to vector<8x128xbf16>
    %c0_17 = arith.constant 0 : index
    %c0_18 = arith.constant 0 : index
    %27 = vector.load %arg7[%c0_17, %c0_18] : memref<128x128xbf16, #tpu.memory_space<vmem>>, vector<128x128xbf16>
    %cst_19 = arith.constant dense<0.000000e+00> : vector<8x128xf32>
    %28 = tpu.matmul %26, %27, %cst_19 {dimension_numbers = #tpu.dot_dimension_numbers<[1], [0], [0], [1], [0, 0, 1, 1], [], []>} : vector<8x128xbf16>, vector<128x128xbf16>, vector<8x128xf32> -> vector<8x128xf32>
    %c0_20 = arith.constant 0 : index
    %c0_21 = arith.constant 0 : index
    %29 = vector.load %arg10[%c0_20, %c0_21] : memref<1x128xf32, #tpu.memory_space<vmem>>, vector<1x128xf32>
    %30 = vector.broadcast %29 : vector<1x128xf32> to vector<8x128xf32>
    %31 = arith.addf %28, %30 : vector<8x128xf32>
    %cst_22 = arith.constant 0.000000e+00 : f32
    %32 = vector.broadcast %cst_22 : f32 to vector<8x128xf32>
    %33 = arith.maximumf %31, %32 : vector<8x128xf32>
    %c0_23 = arith.constant 0 : index
    %c0_24 = arith.constant 0 : index
    %c0_25 = arith.constant 0 : index
    %34 = vector.load %arg5[%c0_23, %c0_24, %c0_25] : memref<1x8x128xf32, #tpu.memory_space<vmem>>, vector<1x8x128xf32>
    %35 = vector.shape_cast %34 : vector<1x8x128xf32> to vector<8x128xf32>
    %cst_26 = arith.constant 5.000000e-02 : f32
    %36 = vector.broadcast %cst_26 : f32 to vector<8x128xf32>
    %37 = arith.mulf %36, %35 : vector<8x128xf32>
    %38 = arith.addf %33, %37 : vector<8x128xf32>
    %39 = arith.truncf %38 : vector<8x128xf32> to vector<8x128xbf16>
    %c0_27 = arith.constant 0 : index
    %c0_28 = arith.constant 0 : index
    %40 = vector.load %arg8[%c0_27, %c0_28] : memref<128x128xbf16, #tpu.memory_space<vmem>>, vector<128x128xbf16>
    %cst_29 = arith.constant dense<0.000000e+00> : vector<8x128xf32>
    %41 = tpu.matmul %39, %40, %cst_29 {dimension_numbers = #tpu.dot_dimension_numbers<[1], [0], [0], [1], [0, 0, 1, 1], [], []>} : vector<8x128xbf16>, vector<128x128xbf16>, vector<8x128xf32> -> vector<8x128xf32>
    %c0_30 = arith.constant 0 : index
    %c0_31 = arith.constant 0 : index
    %42 = vector.load %arg11[%c0_30, %c0_31] : memref<1x128xf32, #tpu.memory_space<vmem>>, vector<1x128xf32>
    %43 = vector.broadcast %42 : vector<1x128xf32> to vector<8x128xf32>
    %44 = arith.addf %41, %43 : vector<8x128xf32>
    %c0_32 = arith.constant 0 : index
    %c0_33 = arith.constant 0 : index
    %45 = vector.load %arg12[%c0_32, %c0_33] : memref<8x128xf32, #tpu.memory_space<vmem>>, vector<8x128xf32>
    %46 = arith.addf %45, %44 : vector<8x128xf32>
    %c0_34 = arith.constant 0 : index
    %c0_35 = arith.constant 0 : index
    %47 = vector.load %arg12[%c0_34, %c0_35] : memref<8x128xf32, #tpu.memory_space<vmem>>, vector<8x128xf32>
    tpu.vector_store %arg12[%c0_34, %c0_35], %46 {strides = array<i32>} : memref<8x128xf32, #tpu.memory_space<vmem>>, vector<8x128xf32>,
    %c0_36 = arith.constant 0 : index
    %c0_37 = arith.constant 0 : index
    %48 = vector.load %arg13[%c0_36, %c0_37] : memref<8x128xf32, #tpu.memory_space<vmem>>, vector<8x128xf32>
    %49 = arith.mulf %44, %44 : vector<8x128xf32>
    %50 = arith.addf %48, %49 : vector<8x128xf32>
    %c0_38 = arith.constant 0 : index
    %c0_39 = arith.constant 0 : index
    %51 = vector.load %arg13[%c0_38, %c0_39] : memref<8x128xf32, #tpu.memory_space<vmem>>, vector<8x128xf32>
    tpu.vector_store %arg13[%c0_38, %c0_39], %50 {strides = array<i32>} : memref<8x128xf32, #tpu.memory_space<vmem>>, vector<8x128xf32>,
    return
  }
  func.func @transform_0(%arg0: i32, %arg1: i32) -> (i32, i32) {
    %c0_i32 = arith.constant 0 : i32
    %c0_i32_0 = arith.constant 0 : i32
    return %arg0, %c0_i32 : i32, i32
  }
  func.func @transform_1(%arg0: i32, %arg1: i32) -> (i32, i32, i32) {
    %c0_i32 = arith.constant 0 : i32
    %c0_i32_0 = arith.constant 0 : i32
    return %arg1, %arg0, %c0_i32 : i32, i32, i32
  }
  func.func @transform_2(%arg0: i32, %arg1: i32) -> (i32, i32, i32) {
    %c0_i32 = arith.constant 0 : i32
    %c0_i32_0 = arith.constant 0 : i32
    return %arg1, %arg0, %c0_i32 : i32, i32, i32
  }
  func.func @transform_3(%arg0: i32, %arg1: i32) -> (i32, i32, i32) {
    %c0_i32 = arith.constant 0 : i32
    %c0_i32_0 = arith.constant 0 : i32
    return %arg1, %arg0, %c0_i32 : i32, i32, i32
  }
  func.func @transform_4(%arg0: i32, %arg1: i32) -> (i32, i32) {
    %c0_i32 = arith.constant 0 : i32
    %c0_i32_0 = arith.constant 0 : i32
    %c0_i32_1 = arith.constant 0 : i32
    return %c0_i32, %c0_i32_0 : i32, i32
  }
  func.func @transform_5(%arg0: i32, %arg1: i32) -> (i32, i32) {
    %c0_i32 = arith.constant 0 : i32
    %c0_i32_0 = arith.constant 0 : i32
    %c0_i32_1 = arith.constant 0 : i32
    return %c0_i32, %c0_i32_0 : i32, i32
  }
  func.func @transform_6(%arg0: i32, %arg1: i32) -> (i32, i32) {
    %c0_i32 = arith.constant 0 : i32
    %c0_i32_0 = arith.constant 0 : i32
    %c0_i32_1 = arith.constant 0 : i32
    return %c0_i32, %c0_i32_0 : i32, i32
  }
  func.func @transform_7(%arg0: i32, %arg1: i32) -> (i32, i32) {
    %c0_i32 = arith.constant 0 : i32
    %c0_i32_0 = arith.constant 0 : i32
    %c0_i32_1 = arith.constant 0 : i32
    return %c0_i32, %c0_i32_0 : i32, i32
  }
  func.func @transform_8(%arg0: i32, %arg1: i32) -> (i32, i32) {
    %c0_i32 = arith.constant 0 : i32
    %c0_i32_0 = arith.constant 0 : i32
    %c0_i32_1 = arith.constant 0 : i32
    return %c0_i32, %c0_i32_0 : i32, i32
  }
  func.func @transform_9(%arg0: i32, %arg1: i32) -> (i32, i32) {
    %c0_i32 = arith.constant 0 : i32
    %c0_i32_0 = arith.constant 0 : i32
    %c0_i32_1 = arith.constant 0 : i32
    return %c0_i32, %c0_i32_0 : i32, i32
  }
  func.func @transform_10(%arg0: i32, %arg1: i32) -> (i32, i32) {
    %c0_i32 = arith.constant 0 : i32
    %c0_i32_0 = arith.constant 0 : i32
    return %arg0, %c0_i32 : i32, i32
  }
  func.func @transform_11(%arg0: i32, %arg1: i32) -> (i32, i32) {
    %c0_i32 = arith.constant 0 : i32
    %c0_i32_0 = arith.constant 0 : i32
    return %arg0, %c0_i32 : i32, i32
  }
}

</mosaic_0001>

<llo_original>
// kernel: _rse_forward.3
$region0: #{_rse_forward.3}
  #allocation0 [shape = 'u32[]', space=smem, size = 0x4, offset = 0x4, fixed_abs, tag = 'smem constant byte address 0x4 - core index']
  #allocation1 [shape = 'u32[72,128]{1,0:T(1,128)}', space=vmem, size = 0x9000, scoped, tag = 'internal scratch']
  %s0 = inlined_call_operand.vmem [shape: f32[8,256], index: 0, kind: input, shape index: {}]
  %s1 = inlined_call_operand.vmem [shape: f32[4,8,256], index: 1, kind: input, shape index: {}]
  %s2 = inlined_call_operand.vmem [shape: f32[4,8,128], index: 2, kind: input, shape index: {}]
  %s3 = inlined_call_operand.vmem [shape: f32[4,8,128], index: 3, kind: input, shape index: {}]
  %s4 = inlined_call_operand.vmem [shape: bf16[256,128], index: 4, kind: input, shape index: {}]
  %s5 = inlined_call_operand.vmem [shape: bf16[128,128], index: 5, kind: input, shape index: {}]
  %s6 = inlined_call_operand.hbm [shape: bf16[128,128], index: 6, kind: input, shape index: {}]
  %s7 = inlined_call_operand.vmem [shape: f32[1,128], index: 7, kind: input, shape index: {}]
  %s8 = inlined_call_operand.vmem [shape: f32[1,128], index: 8, kind: input, shape index: {}]
  %s9 = inlined_call_operand.vmem [shape: f32[1,128], index: 9, kind: input, shape index: {}]
  %s10 = inlined_call_operand.vmem [shape: f32[8,128], index: 10, kind: output, shape index: {0}]
  %s11 = inlined_call_operand.vmem [shape: f32[8,128], index: 11, kind: output, shape index: {1}]
  %12 = xla_tuple %s10, %s11
  %s13 = sld [smem:[#allocation0]]
  $region89: #{_rse_forward.3} parent=0
    _
  %s15 = ssub.s32 1, %s13
  %s16 = scalar_select 0, %s15, %s13
  $region1: #{_rse_forward.3} parent=0
    #allocation2 [shape = 'u8[32768]{0}', space=vmem, size = 0x8000, scoped, tag = 'input window, operand 6, single buffered']
    #allocation3 [shape = 's32[2]{0}', space=sflag, size = 0x8, scoped, tag = 'scoped memory for _rse_forward.3']
    %17 = vsyncpa [#allocation3], 0
    loop: start=0, step=1, limit=6
    $region2: #{_rse_forward.3} parent=1 // loop_pre_header
      _
    $region3: #{_rse_forward.3} parent=1 // loop_header
      %s19 = sphi 0, %s23
      %p20 = scmp.ge.s32.totalorder %s19, 6
      %s26 = sphi 0, %s38
      %s27 = sphi 0, %s34
      %s28 = sphi 0, %s26
      %s29 = sphi 0, %s27
      %s30 = sphi 0, %s28
      %s31 = sphi 0, %s29
      %s41 = sphi 0, %s43
      %s44 = sphi 0, %s41
      %s45 = sphi 0, %s44
      %s61 = sphi 0, %s45
      %s69 = sphi 0, %s71
      %s72 = sphi 0, %s69
      %s73 = sphi 0, %s72
      %s89 = sphi 0, %s73
      %s97 = sphi 0, %s99
      %s100 = sphi 0, %s97
      %s101 = sphi 0, %s100
      %s117 = sphi 0, %s101
      %s125 = sphi 0, %s127
      %s128 = sphi 0, %s125
      %s129 = sphi 0, %s128
      %s145 = sphi 0, %s129
      %s149 = sphi 0, %s149
      %s151 = sphi 0, %s149
      %s152 = sphi 0, %s151
      %s166 = sphi 0, %s152
      %s170 = sphi 0, %s170
      %s172 = sphi 0, %s170
      %s173 = sphi 0, %s172
      %s187 = sphi 0, %s173
      %s191 = sphi 0, %s191
      %s193 = sphi 0, %s191
      %s194 = sphi 0, %s193
      %s208 = sphi 0, %s194
      %s212 = sphi 0, %s212
      %s214 = sphi 0, %s212
      %s215 = sphi 0, %s214
      %s229 = sphi 0, %s215
      %s233 = sphi 0, %s233
      %s235 = sphi 0, %s233
      %s236 = sphi 0, %s235
      %s250 = sphi 0, %s236
      %s254 = sphi 0, %s254
      %s256 = sphi 0, %s254
      %s257 = sphi 0, %s256
      %s271 = sphi 0, %s257
      %s277 = sphi 0, %s279
      %s280 = sphi 0, %s277
      %s281 = sphi 0, %s280
      %s297 = sphi 0, %s281
      %s303 = sphi 0, %s305
      %s306 = sphi 0, %s303
      %s307 = sphi 0, %s306
      %s323 = sphi 0, %s307
    $region4: #{_rse_forward.3} parent=1 // loop_header_branch
      %22 = sbr.rel (%p20) target = $region8
    $region5: #{_rse_forward.3} parent=1 // loop_body
      %s24 = ssub.s32 %s19, 1
      %s25 = ssub.s32 %s19, 2
      %s32 = sadd.s32 1, %s27
      %p33 = scmp.ge.s32.totalorder %s32, 4
      %s34 = scalar_select %p33, 0, %s32
      %s35 = sadd.s32 1, %s26
      %s36 = scalar_select %p33, %s35, %s26
      %p37 = scmp.ge.s32.totalorder %s36, 1
      %s38 = scalar_select %p37, 0, %s36
      %s39 = ssub.s32 %s26, %s38
      %p40 = scmp.eq.s32.totalorder %s39, 0
      %s42 = sadd.s32 %s41, 1
      %s43 = scalar_select %p40, %s41, %s42
      %p46 = pneg %p40
      %p47 = scmp.eq.s32.totalorder %s19, 3
      %p48 = por %p46, %p47
      %p49 = scmp.ne.s32.totalorder %s41, %s44
      %p50 = scmp.eq.s32.totalorder %s19, 0
      %p51 = por %p49, %p50
      %p52 = scmp.ne.s32.totalorder %s41, %s44
      %p53 = scmp.eq.s32.totalorder %s24, 3
      %p54 = por %p52, %p53
      %p55 = scmp.ne.s32.totalorder %s44, %s45
      %p56 = scmp.eq.s32.totalorder %s24, 0
      %p57 = por %p55, %p56
      %p58 = scmp.ne.s32.totalorder %s44, %s45
      %p59 = scmp.eq.s32.totalorder %s25, 3
      %p60 = por %p58, %p59
      %p62 = scmp.ne.s32.totalorder %s45, %s61
      %p63 = scmp.eq.s32.totalorder %s25, 0
      %p64 = por %p62, %p63
      %s65 = ssub.s32 %s27, %s34
      %s66 = ssub.s32 %s26, %s38
      %s67 = sor.u32 %s65, %s66
      %p68 = scmp.eq.s32.totalorder %s67, 0
      %s70 = sadd.s32 %s69, 1
      %s71 = scalar_select %p68, %s69, %s70
      %p74 = pneg %p68
      %p75 = scmp.eq.s32.totalorder %s19, 3
      %p76 = por %p74, %p75
      %p77 = scmp.ne.s32.totalorder %s69, %s72
      %p78 = scmp.eq.s32.totalorder %s19, 0
      %p79 = por %p77, %p78
      %p80 = scmp.ne.s32.totalorder %s69, %s72
      %p81 = scmp.eq.s32.totalorder %s24, 3
      %p82 = por %p80, %p81
      %p83 = scmp.ne.s32.totalorder %s72, %s73
      %p84 = scmp.eq.s32.totalorder %s24, 0
      %p85 = por %p83, %p84
      %p86 = scmp.ne.s32.totalorder %s72, %s73
      %p87 = scmp.eq.s32.totalorder %s25, 3
      %p88 = por %p86, %p87
      %p90 = scmp.ne.s32.totalorder %s73, %s89
      %p91 = scmp.eq.s32.totalorder %s25, 0
      %p92 = por %p90, %p91
      %s93 = ssub.s32 %s27, %s34
      %s94 = ssub.s32 %s26, %s38
      %s95 = sor.u32 %s93, %s94
      %p96 = scmp.eq.s32.totalorder %s95, 0
      %s98 = sadd.s32 %s97, 1
      %s99 = scalar_select %p96, %s97, %s98
      %p102 = pneg %p96
      %p103 = scmp.eq.s32.totalorder %s19, 3
      %p104 = por %p102, %p103
      %p105 = scmp.ne.s32.totalorder %s97, %s100
      %p106 = scmp.eq.s32.totalorder %s19, 0
      %p107 = por %p105, %p106
      %p108 = scmp.ne.s32.totalorder %s97, %s100
      %p109 = scmp.eq.s32.totalorder %s24, 3
      %p110 = por %p108, %p109
      %p111 = scmp.ne.s32.totalorder %s100, %s101
      %p112 = scmp.eq.s32.totalorder %s24, 0
      %p113 = por %p111, %p112
      %p114 = scmp.ne.s32.totalorder %s100, %s101
      %p115 = scmp.eq.s32.totalorder %s25, 3
      %p116 = por %p114, %p115
      %p118 = scmp.ne.s32.totalorder %s101, %s117
      %p119 = scmp.eq.s32.totalorder %s25, 0
      %p120 = por %p118, %p119
      %s121 = ssub.s32 %s27, %s34
      %s122 = ssub.s32 %s26, %s38
      %s123 = sor.u32 %s121, %s122
      %p124 = scmp.eq.s32.totalorder %s123, 0
      %s126 = sadd.s32 %s125, 1
      %s127 = scalar_select %p124, %s125, %s126
      %p130 = pneg %p124
      %p131 = scmp.eq.s32.totalorder %s19, 3
      %p132 = por %p130, %p131
      %p133 = scmp.ne.s32.totalorder %s125, %s128
      %p134 = scmp.eq.s32.totalorder %s19, 0
      %p135 = por %p133, %p134
      %p136 = scmp.ne.s32.totalorder %s125, %s128
      %p137 = scmp.eq.s32.totalorder %s24, 3
      %p138 = por %p136, %p137
      %p139 = scmp.ne.s32.totalorder %s128, %s129
      %p140 = scmp.eq.s32.totalorder %s24, 0
      %p141 = por %p139, %p140
      %p142 = scmp.ne.s32.totalorder %s128, %s129
      %p143 = scmp.eq.s32.totalorder %s25, 3
      %p144 = por %p142, %p143
      %p146 = scmp.ne.s32.totalorder %s129, %s145
      %p147 = scmp.eq.s32.totalorder %s25, 0
      %p148 = por %p146, %p147
      %s150 = sadd.s32 %s149, 1
      %p153 = scmp.eq.s32.totalorder %s19, 3
      %p154 = scmp.ne.s32.totalorder %s149, %s151
      %p155 = scmp.eq.s32.totalorder %s19, 0
      %p156 = por %p154, %p155
      %p157 = scmp.ne.s32.totalorder %s149, %s151
      %p158 = scmp.eq.s32.totalorder %s24, 3
      %p159 = por %p157, %p158
      %p160 = scmp.ne.s32.totalorder %s151, %s152
      %p161 = scmp.eq.s32.totalorder %s24, 0
      %p162 = por %p160, %p161
      %p163 = scmp.ne.s32.totalorder %s151, %s152
      %p164 = scmp.eq.s32.totalorder %s25, 3
      %p165 = por %p163, %p164
      %p167 = scmp.ne.s32.totalorder %s152, %s166
      %p168 = scmp.eq.s32.totalorder %s25, 0
      %p169 = por %p167, %p168
      %s171 = sadd.s32 %s170, 1
      %p174 = scmp.eq.s32.totalorder %s19, 3
      %p175 = scmp.ne.s32.totalorder %s170, %s172
      %p176 = scmp.eq.s32.totalorder %s19, 0
      %p177 = por %p175, %p176
      %p178 = scmp.ne.s32.totalorder %s170, %s172
      %p179 = scmp.eq.s32.totalorder %s24, 3
      %p180 = por %p178, %p179
      %p181 = scmp.ne.s32.totalorder %s172, %s173
      %p182 = scmp.eq.s32.totalorder %s24, 0
      %p183 = por %p181, %p182
      %p184 = scmp.ne.s32.totalorder %s172, %s173
      %p185 = scmp.eq.s32.totalorder %s25, 3
      %p186 = por %p184, %p185
      %p188 = scmp.ne.s32.totalorder %s173, %s187
      %p189 = scmp.eq.s32.totalorder %s25, 0
      %p190 = por %p188, %p189
      %s192 = sadd.s32 %s191, 1
      %p195 = scmp.eq.s32.totalorder %s19, 3
      %p196 = scmp.ne.s32.totalorder %s191, %s193
      %p197 = scmp.eq.s32.totalorder %s19, 0
      %p198 = por %p196, %p197
      %p199 = scmp.ne.s32.totalorder %s191, %s193
      %p200 = scmp.eq.s32.totalorder %s24, 3
      %p201 = por %p199, %p200
      %p202 = scmp.ne.s32.totalorder %s193, %s194
      %p203 = scmp.eq.s32.totalorder %s24, 0
      %p204 = por %p202, %p203
      %p205 = scmp.ne.s32.totalorder %s193, %s194
      %p206 = scmp.eq.s32.totalorder %s25, 3
      %p207 = por %p205, %p206
      %p209 = scmp.ne.s32.totalorder %s194, %s208
      %p210 = scmp.eq.s32.totalorder %s25, 0
      %p211 = por %p209, %p210
      %s213 = sadd.s32 %s212, 1
      %p216 = scmp.eq.s32.totalorder %s19, 3
      %p217 = scmp.ne.s32.totalorder %s212, %s214
      %p218 = scmp.eq.s32.totalorder %s19, 0
      %p219 = por %p217, %p218
      %p220 = scmp.ne.s32.totalorder %s212, %s214
      %p221 = scmp.eq.s32.totalorder %s24, 3
      %p222 = por %p220, %p221
      %p223 = scmp.ne.s32.totalorder %s214, %s215
      %p224 = scmp.eq.s32.totalorder %s24, 0
      %p225 = por %p223, %p224
      %p226 = scmp.ne.s32.totalorder %s214, %s215
      %p227 = scmp.eq.s32.totalorder %s25, 3
      %p228 = por %p226, %p227
      %p230 = scmp.ne.s32.totalorder %s215, %s229
      %p231 = scmp.eq.s32.totalorder %s25, 0
      %p232 = por %p230, %p231
      %s234 = sadd.s32 %s233, 1
      %p237 = scmp.eq.s32.totalorder %s19, 3
      %p238 = scmp.ne.s32.totalorder %s233, %s235
      %p239 = scmp.eq.s32.totalorder %s19, 0
      %p240 = por %p238, %p239
      %p241 = scmp.ne.s32.totalorder %s233, %s235
      %p242 = scmp.eq.s32.totalorder %s24, 3
      %p243 = por %p241, %p242
      %p244 = scmp.ne.s32.totalorder %s235, %s236
      %p245 = scmp.eq.s32.totalorder %s24, 0
      %p246 = por %p244, %p245
      %p247 = scmp.ne.s32.totalorder %s235, %s236
      %p248 = scmp.eq.s32.totalorder %s25, 3
      %p249 = por %p247, %p248
      %p251 = scmp.ne.s32.totalorder %s236, %s250
      %p252 = scmp.eq.s32.totalorder %s25, 0
      %p253 = por %p251, %p252
      %s255 = sadd.s32 %s254, 1
      %p258 = scmp.eq.s32.totalorder %s19, 3
      %p259 = scmp.ne.s32.totalorder %s254, %s256
      %p260 = scmp.eq.s32.totalorder %s19, 0
      %p261 = por %p259, %p260
      %p262 = scmp.ne.s32.totalorder %s254, %s256
      %p263 = scmp.eq.s32.totalorder %s24, 3
      %p264 = por %p262, %p263
      %p265 = scmp.ne.s32.totalorder %s256, %s257
      %p266 = scmp.eq.s32.totalorder %s24, 0
      %p267 = por %p265, %p266
      %p268 = scmp.ne.s32.totalorder %s256, %s257
      %p269 = scmp.eq.s32.totalorder %s25, 3
      %p270 = por %p268, %p269
      %p272 = scmp.ne.s32.totalorder %s257, %s271
      %p273 = scmp.eq.s32.totalorder %s25, 0
      %p274 = por %p272, %p273
      %s275 = ssub.s32 %s26, %s38
      %p276 = scmp.eq.s32.totalorder %s275, 0
      %s278 = sadd.s32 %s277, 1
      %s279 = scalar_select %p276, %s277, %s278
      %p282 = pneg %p276
      %p283 = scmp.eq.s32.totalorder %s19, 3
      %p284 = por %p282, %p283
      %p285 = scmp.ne.s32.totalorder %s277, %s280
      %p286 = scmp.eq.s32.totalorder %s19, 0
      %p287 = por %p285, %p286
      %p288 = scmp.ne.s32.totalorder %s277, %s280
      %p289 = scmp.eq.s32.totalorder %s24, 3
      %p290 = por %p288, %p289
      %p291 = scmp.ne.s32.totalorder %s280, %s281
      %p292 = scmp.eq.s32.totalorder %s24, 0
      %p293 = por %p291, %p292
      %p294 = scmp.ne.s32.totalorder %s280, %s281
      %p295 = scmp.eq.s32.totalorder %s25, 3
      %p296 = por %p294, %p295
      %p298 = scmp.ne.s32.totalorder %s281, %s297
      %p299 = scmp.eq.s32.totalorder %s25, 0
      %p300 = por %p298, %p299
      %s301 = ssub.s32 %s26, %s38
      %p302 = scmp.eq.s32.totalorder %s301, 0
      %s304 = sadd.s32 %s303, 1
      %s305 = scalar_select %p302, %s303, %s304
      %p308 = pneg %p302
      %p309 = scmp.eq.s32.totalorder %s19, 3
      %p310 = por %p308, %p309
      %p311 = scmp.ne.s32.totalorder %s303, %s306
      %p312 = scmp.eq.s32.totalorder %s19, 0
      %p313 = por %p311, %p312
      %p314 = scmp.ne.s32.totalorder %s303, %s306
      %p315 = scmp.eq.s32.totalorder %s24, 3
      %p316 = por %p314, %p315
      %p317 = scmp.ne.s32.totalorder %s306, %s307
      %p318 = scmp.eq.s32.totalorder %s24, 0
      %p319 = por %p317, %p318
      %p320 = scmp.ne.s32.totalorder %s306, %s307
      %p321 = scmp.eq.s32.totalorder %s25, 3
      %p322 = por %p320, %p321
      %p324 = scmp.ne.s32.totalorder %s307, %s323
      %p325 = scmp.eq.s32.totalorder %s25, 0
      %p326 = por %p324, %p325
      %p327 = scmp.le.s32.totalorder 1, %s19
      %p328 = scmp.lt.s32.totalorder %s19, 5
      %p329 = pnand %p327, %p328
      %p330 = pneg %p329
      // Predicated region
      $region9: #{_rse_forward.3} parent=5 // pred_check
        _
      $region10: #{_rse_forward.3} parent=5 // pred_check_branch
        %332 = sbr.rel (%p329) target = $region12
      $region11: #{_rse_forward.3} parent=5 // pred_region
        %s333 = ssub.s32 %s19, 1
        // Predicated region
        $region13: #{_rse_forward.3} parent=11 // pred_check
          %p334 = pneg %p57
        $region14: #{_rse_forward.3} parent=11 // pred_check_branch
          %336 = sbr.rel (%p334) target = $region16
        $region15: #{_rse_forward.3} parent=11 // pred_region
          %p337 = scmp.lt.s32.totalorder %s28, 0
          %s338 = scalar_select %p337, %s28, 0
          %s339 = smul.addr %s338, 2
          %s340 = smul.addr %s339, 8
          %s341 = scalar_lea.vmem %s0, %s340
        $region16: #{_rse_forward.3} parent=11 // pred_fallthru
          _
        // Predicated region
        $region17: #{_rse_forward.3} parent=11 // pred_check
          %p342 = pneg %p162
        $region18: #{_rse_forward.3} parent=11 // pred_check_branch
          %344 = sbr.rel (%p342) target = $region20
        $region19: #{_rse_forward.3} parent=11 // pred_region
          _
        $region20: #{_rse_forward.3} parent=11 // pred_fallthru
          _
        // Predicated region
        $region21: #{_rse_forward.3} parent=11 // pred_check
          %p345 = pneg %p183
        $region22: #{_rse_forward.3} parent=11 // pred_check_branch
          %347 = sbr.rel (%p345) target = $region24
        $region23: #{_rse_forward.3} parent=11 // pred_region
          _
        $region24: #{_rse_forward.3} parent=11 // pred_fallthru
          _
        // Predicated region
        $region25: #{_rse_forward.3} parent=11 // pred_check
          %p348 = pneg %p204
        $region26: #{_rse_forward.3} parent=11 // pred_check_branch
          %350 = sbr.rel (%p348) target = $region28
        $region27: #{_rse_forward.3} parent=11 // pred_region
          %352 = vsyncadd [#allocation3], 0
          %s353 = sshll.u32 %s6, 4
          %s354 = int_to_ptr.hbm [resolvable:$true] %s353
          %s355 = sshll.u32 [#allocation2], 4
          %s356 = int_to_ptr.vmem [resolvable:$true] %s355
          %361 = dma.hbm_to_vmem [thread:$0]  %s354, 1024, %s356, [#allocation3], 64, 64, 4
        $region28: #{_rse_forward.3} parent=11 // pred_fallthru
          _
        // Predicated region
        $region29: #{_rse_forward.3} parent=11 // pred_check
          %p362 = pneg %p225
        $region30: #{_rse_forward.3} parent=11 // pred_check_branch
          %364 = sbr.rel (%p362) target = $region32
        $region31: #{_rse_forward.3} parent=11 // pred_region
          _
        $region32: #{_rse_forward.3} parent=11 // pred_fallthru
          _
        // Predicated region
        $region33: #{_rse_forward.3} parent=11 // pred_check
          %p365 = pneg %p246
        $region34: #{_rse_forward.3} parent=11 // pred_check_branch
          %367 = sbr.rel (%p365) target = $region36
        $region35: #{_rse_forward.3} parent=11 // pred_region
          _
        $region36: #{_rse_forward.3} parent=11 // pred_fallthru
          _
        // Predicated region
        $region37: #{_rse_forward.3} parent=11 // pred_check
          %p368 = pneg %p267
        $region38: #{_rse_forward.3} parent=11 // pred_check_branch
          %370 = sbr.rel (%p368) target = $region40
        $region39: #{_rse_forward.3} parent=11 // pred_region
          _
        $region40: #{_rse_forward.3} parent=11 // pred_fallthru
          _
      $region12: #{_rse_forward.3} parent=5 // pred_fallthru
        _
      %p371 = scmp.lt.s32.totalorder %s19, 4
      // Predicated region
      $region41: #{_rse_forward.3} parent=5 // pred_check
        %p372 = pneg %p371
      $region42: #{_rse_forward.3} parent=5 // pred_check_branch
        %374 = sbr.rel (%p372) target = $region44
      $region43: #{_rse_forward.3} parent=5 // pred_region
        // Predicated region
        $region45: #{_rse_forward.3} parent=43 // pred_check
          %p375 = pneg %p79
        $region46: #{_rse_forward.3} parent=43 // pred_check_branch
          %377 = sbr.rel (%p375) target = $region48
        $region47: #{_rse_forward.3} parent=43 // pred_region
          %p378 = scmp.lt.s32.totalorder %s27, 3
          %s379 = scalar_select %p378, %s27, 3
          %p380 = scmp.lt.s32.totalorder %s26, 0
          %s381 = scalar_select %p380, %s26, 0
          %s382 = smul.addr %s381, 2
          %s383 = smul.addr %s379, 2
          %s384 = sadd.s32 %s382, %s383
          %s385 = smul.addr %s384, 8
          %s386 = scalar_lea.vmem %s1, %s385
        $region48: #{_rse_forward.3} parent=43 // pred_fallthru
          _
        // Predicated region
        $region49: #{_rse_forward.3} parent=43 // pred_check
          %p387 = pneg %p107
        $region50: #{_rse_forward.3} parent=43 // pred_check_branch
          %389 = sbr.rel (%p387) target = $region52
        $region51: #{_rse_forward.3} parent=43 // pred_region
          %p390 = scmp.lt.s32.totalorder %s27, 3
          %s391 = scalar_select %p390, %s27, 3
          %p392 = scmp.lt.s32.totalorder %s26, 0
          %s393 = scalar_select %p392, %s26, 0
          %s394 = sadd.s32 %s393, %s391
          %s395 = smul.addr %s394, 8
          %s396 = scalar_lea.vmem %s2, %s395
        $region52: #{_rse_forward.3} parent=43 // pred_fallthru
          _
        // Predicated region
        $region53: #{_rse_forward.3} parent=43 // pred_check
          %p397 = pneg %p135
        $region54: #{_rse_forward.3} parent=43 // pred_check_branch
          %399 = sbr.rel (%p397) target = $region56
        $region55: #{_rse_forward.3} parent=43 // pred_region
          %p400 = scmp.lt.s32.totalorder %s27, 3
          %s401 = scalar_select %p400, %s27, 3
          %p402 = scmp.lt.s32.totalorder %s26, 0
          %s403 = scalar_select %p402, %s26, 0
          %s404 = sadd.s32 %s403, %s401
          %s405 = smul.addr %s404, 8
          %s406 = scalar_lea.vmem %s3, %s405
        $region56: #{_rse_forward.3} parent=43 // pred_fallthru
          _
      $region44: #{_rse_forward.3} parent=5 // pred_fallthru
        _
      %p407 = scmp.le.s32.totalorder 1, %s19
      %p408 = scmp.lt.s32.totalorder %s19, 5
      %p409 = pnand %p407, %p408
      %p410 = pneg %p409
      // Predicated region
      $region57: #{_rse_forward.3} parent=5 // pred_check
        _
      $region58: #{_rse_forward.3} parent=5 // pred_check_branch
        %412 = sbr.rel (%p409) target = $region60
      $region59: #{_rse_forward.3} parent=5 // pred_region
        %s413 = ssub.s32 %s19, 1
        // Predicated region
        $region61: #{_rse_forward.3} parent=59 // pred_check
          %p414 = pneg %p204
        $region62: #{_rse_forward.3} parent=59 // pred_check_branch
          %416 = sbr.rel (%p414) target = $region64
        $region63: #{_rse_forward.3} parent=59 // pred_region
          %418 = dma.done [#allocation3], 1024
        $region64: #{_rse_forward.3} parent=59 // pred_fallthru
          _
        %p419 = scmp.lt.s32.totalorder %s28, 0
        %s420 = scalar_select %p419, %s28, 0
        %s421 = smul.addr %s420, 2
        %s422 = smul.addr %s421, 8
        %s423 = scalar_lea.vmem %s0, %s422
        %p424 = pneg %p57
        %p425 = pneg %p54
        %p426 = scmp.lt.s32.totalorder %s29, 3
        %s427 = scalar_select %p426, %s29, 3
        %p428 = scmp.lt.s32.totalorder %s28, 0
        %s429 = scalar_select %p428, %s28, 0
        %s430 = smul.addr %s429, 2
        %s431 = smul.addr %s427, 2
        %s432 = sadd.s32 %s430, %s431
        %s433 = smul.addr %s432, 8
        %s434 = scalar_lea.vmem %s1, %s433
        %p435 = pneg %p85
        %p436 = pneg %p82
        %p437 = scmp.lt.s32.totalorder %s29, 3
        %s438 = scalar_select %p437, %s29, 3
        %p439 = scmp.lt.s32.totalorder %s28, 0
        %s440 = scalar_select %p439, %s28, 0
        %s441 = sadd.s32 %s440, %s438
        %s442 = smul.addr %s441, 8
        %s443 = scalar_lea.vmem %s2, %s442
        %p444 = pneg %p113
        %p445 = pneg %p110
        %p446 = scmp.lt.s32.totalorder %s29, 3
        %s447 = scalar_select %p446, %s29, 3
        %p448 = scmp.lt.s32.totalorder %s28, 0
        %s449 = scalar_select %p448, %s28, 0
        %s450 = sadd.s32 %s449, %s447
        %s451 = smul.addr %s450, 8
        %s452 = scalar_lea.vmem %s3, %s451
        %p453 = pneg %p141
        %p454 = pneg %p138
        %p455 = pneg %p162
        %p456 = pneg %p159
        %p457 = pneg %p183
        %p458 = pneg %p180
        %p459 = pneg %p204
        %p460 = pneg %p201
        %p461 = pneg %p225
        %p462 = pneg %p222
        %p463 = pneg %p246
        %p464 = pneg %p243
        %p465 = pneg %p267
        %p466 = pneg %p264
        %p467 = pneg %p293
        %p468 = pneg %p290
        %p469 = scmp.lt.s32.totalorder %s28, 0
        %s470 = scalar_select %p469, %s28, 0
        %s471 = smul.addr %s470, 8
        %s472 = scalar_lea.vmem %s10, %s471
        %p473 = pneg %p319
        %p474 = pneg %p316
        %p475 = scmp.lt.s32.totalorder %s28, 0
        %s476 = scalar_select %p475, %s28, 0
        %s477 = smul.addr %s476, 8
        %s478 = scalar_lea.vmem %s11, %s477
        %p479 = scmp.lt.s32.totalorder %s28, 0
        %s480 = scalar_select %p479, %s28, 0
        %s481 = smul.addr %s480, 2
        %s482 = smul.addr %s481, 8
        %s483 = scalar_lea.vmem %s0, %s482
        %p484 = scmp.lt.s32.totalorder %s29, 3
        %s485 = scalar_select %p484, %s29, 3
        %p486 = scmp.lt.s32.totalorder %s28, 0
        %s487 = scalar_select %p486, %s28, 0
        %s488 = smul.addr %s487, 2
        %s489 = smul.addr %s485, 2
        %s490 = sadd.s32 %s488, %s489
        %s491 = smul.addr %s490, 8
        %s492 = scalar_lea.vmem %s1, %s491
        %p493 = scmp.lt.s32.totalorder %s29, 3
        %s494 = scalar_select %p493, %s29, 3
        %p495 = scmp.lt.s32.totalorder %s28, 0
        %s496 = scalar_select %p495, %s28, 0
        %s497 = sadd.s32 %s496, %s494
        %s498 = smul.addr %s497, 8
        %s499 = scalar_lea.vmem %s2, %s498
        %p500 = scmp.lt.s32.totalorder %s29, 3
        %s501 = scalar_select %p500, %s29, 3
        %p502 = scmp.lt.s32.totalorder %s28, 0
        %s503 = scalar_select %p502, %s28, 0
        %s504 = sadd.s32 %s503, %s501
        %s505 = smul.addr %s504, 8
        %s506 = scalar_lea.vmem %s3, %s505
        %p507 = scmp.lt.s32.totalorder %s28, 0
        %s508 = scalar_select %p507, %s28, 0
        %s509 = smul.addr %s508, 8
        %s510 = scalar_lea.vmem %s10, %s509
        %p511 = scmp.lt.s32.totalorder %s28, 0
        %s512 = scalar_select %p511, %s28, 0
        %s513 = smul.addr %s512, 8
        %s514 = scalar_lea.vmem %s11, %s513
        %p515 = scmp.eq.s32.totalorder %s29, 0
        // Predicated region
        $region65: #{_rse_forward.3} parent=59 // pred_check
          %p516 = pneg %p515
        $region66: #{_rse_forward.3} parent=59 // pred_check_branch
          %518 = sbr.rel (%p516) target = $region68
        $region67: #{_rse_forward.3} parent=59 // pred_region
          %519 = vst [vmem:[%s510] sm:$0xff] 0.0
          %520 = vst [vmem:[%s514] sm:$0xff] 0.0
        $region68: #{_rse_forward.3} parent=59 // pred_fallthru
          _
        %v521 = vld [vmem:[%s483] sm:$0xff]
        %v522 = vld [vmem:[%s483 + $0x8] sm:$0xff]
        %v523 = vmul.f32 %v521, 3.2456994
        %v524 = vmul.f32 %v522, 3.2456994
        %v525 = vadd.f32 %v523, -0.42421293
        %v526 = vadd.f32 %v524, -0.42421293
        %v527 = vld [vmem:[%s492] sm:$0xff]
        %v528 = vld [vmem:[%s492 + $0x8] sm:$0xff]
        %v529 = vmul.f32 %v527, 0.1
        %v530 = vmul.f32 %v528, 0.1
        %v531 = vadd.f32 %v525, %v529
        %v532 = vadd.f32 %v526, %v530
        %v533 = vpack.c.bf16 %v531, %v531
        %v534 = vpack.c.bf16 %v532, %v532
        %v535 = vld [vmem:[%s4] sm:$0xf]
        %v536 = vld [vmem:[%s4 + $0x4] sm:$0xf]
        %v537 = vld [vmem:[%s4 + $0x8] sm:$0xf]
        %v538 = vld [vmem:[%s4 + $0xc] sm:$0xf]
        %v539 = vld [vmem:[%s4 + $0x10] sm:$0xf]
        %v540 = vld [vmem:[%s4 + $0x14] sm:$0xf]
        %v541 = vld [vmem:[%s4 + $0x18] sm:$0xf]
        %v542 = vld [vmem:[%s4 + $0x1c] sm:$0xf]
        %v543 = vld [vmem:[%s4 + $0x20] sm:$0xf]
        %v544 = vld [vmem:[%s4 + $0x24] sm:$0xf]
        %v545 = vld [vmem:[%s4 + $0x28] sm:$0xf]
        %v546 = vld [vmem:[%s4 + $0x2c] sm:$0xf]
        %v547 = vld [vmem:[%s4 + $0x30] sm:$0xf]
        %v548 = vld [vmem:[%s4 + $0x34] sm:$0xf]
        %v549 = vld [vmem:[%s4 + $0x38] sm:$0xf]
        %v550 = vld [vmem:[%s4 + $0x3c] sm:$0xf]
        %v551 = vld [vmem:[%s4 + $0x40] sm:$0xf]
        %v552 = vld [vmem:[%s4 + $0x44] sm:$0xf]
        %v553 = vld [vmem:[%s4 + $0x48] sm:$0xf]
        %v554 = vld [vmem:[%s4 + $0x4c] sm:$0xf]
        %v555 = vld [vmem:[%s4 + $0x50] sm:$0xf]
        %v556 = vld [vmem:[%s4 + $0x54] sm:$0xf]
        %v557 = vld [vmem:[%s4 + $0x58] sm:$0xf]
        %v558 = vld [vmem:[%s4 + $0x5c] sm:$0xf]
        %v559 = vld [vmem:[%s4 + $0x60] sm:$0xf]
        %v560 = vld [vmem:[%s4 + $0x64] sm:$0xf]
        %v561 = vld [vmem:[%s4 + $0x68] sm:$0xf]
        %v562 = vld [vmem:[%s4 + $0x6c] sm:$0xf]
        %v563 = vld [vmem:[%s4 + $0x70] sm:$0xf]
        %v564 = vld [vmem:[%s4 + $0x74] sm:$0xf]
        %v565 = vld [vmem:[%s4 + $0x78] sm:$0xf]
        %v566 = vld [vmem:[%s4 + $0x7c] sm:$0xf]
        %v567 = vld [vmem:[%s7] sm:$0x1]
        %v569 = vperm.slane %v567, 0
        %v603 = vunpack.c.l.b16 %v535
        %v604 = vunpack.c.l.b16 %v536
        %v605 = vunpack.c.l.b16 %v537
        %v606 = vunpack.c.l.b16 %v538
        %v607 = vunpack.c.l.b16 %v539
        %v608 = vunpack.c.l.b16 %v540
        %v609 = vunpack.c.l.b16 %v541
        %v610 = vunpack.c.l.b16 %v542
        %v611 = vunpack.c.l.b16 %v543
        %v612 = vunpack.c.l.b16 %v544
        %v613 = vunpack.c.l.b16 %v545
        %v614 = vunpack.c.l.b16 %v546
        %v615 = vunpack.c.l.b16 %v547
        %v616 = vunpack.c.l.b16 %v548
        %v617 = vunpack.c.l.b16 %v549
        %v618 = vunpack.c.l.b16 %v550
        %v619 = vunpack.c.l.b16 %v551
        %v620 = vunpack.c.l.b16 %v552
        %v621 = vunpack.c.l.b16 %v553
        %v622 = vunpack.c.l.b16 %v554
        %v623 = vunpack.c.l.b16 %v555
        %v624 = vunpack.c.l.b16 %v556
        %v625 = vunpack.c.l.b16 %v557
        %v626 = vunpack.c.l.b16 %v558
        %v627 = vunpack.c.l.b16 %v559
        %v628 = vunpack.c.l.b16 %v560
        %v629 = vunpack.c.l.b16 %v561
        %v630 = vunpack.c.l.b16 %v562
        %v631 = vunpack.c.l.b16 %v563
        %v632 = vunpack.c.l.b16 %v564
        %v633 = vunpack.c.l.b16 %v565
        %v634 = vunpack.c.l.b16 %v566
        %v635 = vpack.c.b16 %v604, %v603
        %v636 = vpack.c.b16 %v606, %v605
        %v637 = vpack.c.b16 %v608, %v607
        %v638 = vpack.c.b16 %v610, %v609
        %v639 = vpack.c.b16 %v612, %v611
        %v640 = vpack.c.b16 %v614, %v613
        %v641 = vpack.c.b16 %v616, %v615
        %v642 = vpack.c.b16 %v618, %v617
        %v643 = vpack.c.b16 %v620, %v619
        %v644 = vpack.c.b16 %v622, %v621
        %v645 = vpack.c.b16 %v624, %v623
        %v646 = vpack.c.b16 %v626, %v625
        %v647 = vpack.c.b16 %v628, %v627
        %v648 = vpack.c.b16 %v630, %v629
        %v649 = vpack.c.b16 %v632, %v631
        %v650 = vpack.c.b16 %v634, %v633
        %667 = vmatpush.bf16.msra.mxu0 %v642
        %668 = vmatpush.bf16.msra.mxu0 %v641
        %669 = vmatpush.bf16.msra.mxu0 %v640
        %670 = vmatpush.bf16.msra.mxu0 %v639
        %671 = vmatpush.bf16.msra.mxu0 %v638
        %672 = vmatpush.bf16.msra.mxu0 %v637
        %673 = vmatpush.bf16.msra.mxu0 %v636
        %674 = vmatpush.bf16.msra.mxu0 %v635
        %675 = vmatmul.bf16.gmra.mxu0 %v533
        %v676 = vpop.f32.mrf.mxu0
        %v677 = vadd.f32 %v569, %v676
        %v678 = vpop.f32.mrf.mxu0
        %679 = vdwg.mxu0
        %680 = vmatpush.bf16.msra.mxu0 %v650
        %681 = vmatpush.bf16.msra.mxu0 %v649
        %682 = vmatpush.bf16.msra.mxu0 %v648
        %683 = vmatpush.bf16.msra.mxu0 %v647
        %684 = vmatpush.bf16.msra.mxu0 %v646
        %685 = vmatpush.bf16.msra.mxu0 %v645
        %686 = vmatpush.bf16.msra.mxu0 %v644
        %687 = vmatpush.bf16.msra.mxu0 %v643
        %688 = vmatmul.bf16.gmra.mxu0 %v534
        %v689 = vpop.f32.mrf.mxu0
        %v690 = vadd.f32 %v677, %v689
        %v691 = vpop.f32.mrf.mxu0
        %692 = vdwg.mxu0
        %v693 = vmax.f32 %v690, 0.0
        %v694 = vld [vmem:[%s499] sm:$0xff]
        %v695 = vmul.f32 %v694, 0.05
        %v696 = vadd.f32 %v693, %v695
        %v697 = vpack.c.bf16 %v696, %v696
        %v698 = vld [vmem:[%s5] sm:$0xf]
        %v699 = vld [vmem:[%s5 + $0x4] sm:$0xf]
        %v700 = vld [vmem:[%s5 + $0x8] sm:$0xf]
        %v701 = vld [vmem:[%s5 + $0xc] sm:$0xf]
        %v702 = vld [vmem:[%s5 + $0x10] sm:$0xf]
        %v703 = vld [vmem:[%s5 + $0x14] sm:$0xf]
        %v704 = vld [vmem:[%s5 + $0x18] sm:$0xf]
        %v705 = vld [vmem:[%s5 + $0x1c] sm:$0xf]
        %v706 = vld [vmem:[%s5 + $0x20] sm:$0xf]
        %v707 = vld [vmem:[%s5 + $0x24] sm:$0xf]
        %v708 = vld [vmem:[%s5 + $0x28] sm:$0xf]
        %v709 = vld [vmem:[%s5 + $0x2c] sm:$0xf]
        %v710 = vld [vmem:[%s5 + $0x30] sm:$0xf]
        %v711 = vld [vmem:[%s5 + $0x34] sm:$0xf]
        %v712 = vld [vmem:[%s5 + $0x38] sm:$0xf]
        %v713 = vld [vmem:[%s5 + $0x3c] sm:$0xf]
        %v714 = vld [vmem:[%s8] sm:$0x1]
        %v716 = vperm.slane %v714, 0
        %v734 = vunpack.c.l.b16 %v698
        %v735 = vunpack.c.l.b16 %v699
        %v736 = vunpack.c.l.b16 %v700
        %v737 = vunpack.c.l.b16 %v701
        %v738 = vunpack.c.l.b16 %v702
        %v739 = vunpack.c.l.b16 %v703
        %v740 = vunpack.c.l.b16 %v704
        %v741 = vunpack.c.l.b16 %v705
        %v742 = vunpack.c.l.b16 %v706
        %v743 = vunpack.c.l.b16 %v707
        %v744 = vunpack.c.l.b16 %v708
        %v745 = vunpack.c.l.b16 %v709
        %v746 = vunpack.c.l.b16 %v710
        %v747 = vunpack.c.l.b16 %v711
        %v748 = vunpack.c.l.b16 %v712
        %v749 = vunpack.c.l.b16 %v713
        %v750 = vpack.c.b16 %v735, %v734
        %v751 = vpack.c.b16 %v737, %v736
        %v752 = vpack.c.b16 %v739, %v738
        %v753 = vpack.c.b16 %v741, %v740
        %v754 = vpack.c.b16 %v743, %v742
        %v755 = vpack.c.b16 %v745, %v744
        %v756 = vpack.c.b16 %v747, %v746
        %v757 = vpack.c.b16 %v749, %v748
        %766 = vmatpush.bf16.msra.mxu0 %v757
        %767 = vmatpush.bf16.msra.mxu0 %v756
        %768 = vmatpush.bf16.msra.mxu0 %v755
        %769 = vmatpush.bf16.msra.mxu0 %v754
        %770 = vmatpush.bf16.msra.mxu0 %v753
        %771 = vmatpush.bf16.msra.mxu0 %v752
        %772 = vmatpush.bf16.msra.mxu0 %v751
        %773 = vmatpush.bf16.msra.mxu0 %v750
        %774 = vmatmul.bf16.gmra.mxu0 %v697
        %v775 = vpop.f32.mrf.mxu0
        %v776 = vadd.f32 %v716, %v775
        %v777 = vpop.f32.mrf.mxu0
        %778 = vdwg.mxu0
        %v779 = vmax.f32 %v776, 0.0
        %v780 = vld [vmem:[%s506] sm:$0xff]
        %v781 = vmul.f32 %v780, 0.05
        %v782 = vadd.f32 %v779, %v781
        %v783 = vpack.c.bf16 %v782, %v782
        %v784 = vld [vmem:[#allocation2] sm:$0xf]
        %v785 = vld [vmem:[#allocation2 + $0x4] sm:$0xf]
        %v786 = vld [vmem:[#allocation2 + $0x8] sm:$0xf]
        %v787 = vld [vmem:[#allocation2 + $0xc] sm:$0xf]
        %v788 = vld [vmem:[#allocation2 + $0x10] sm:$0xf]
        %v789 = vld [vmem:[#allocation2 + $0x14] sm:$0xf]
        %v790 = vld [vmem:[#allocation2 + $0x18] sm:$0xf]
        %v791 = vld [vmem:[#allocation2 + $0x1c] sm:$0xf]
        %v792 = vld [vmem:[#allocation2 + $0x20] sm:$0xf]
        %v793 = vld [vmem:[#allocation2 + $0x24] sm:$0xf]
        %v794 = vld [vmem:[#allocation2 + $0x28] sm:$0xf]
        %v795 = vld [vmem:[#allocation2 + $0x2c] sm:$0xf]
        %v796 = vld [vmem:[#allocation2 + $0x30] sm:$0xf]
        %v797 = vld [vmem:[#allocation2 + $0x34] sm:$0xf]
        %v798 = vld [vmem:[#allocation2 + $0x38] sm:$0xf]
        %v799 = vld [vmem:[#allocation2 + $0x3c] sm:$0xf]
        %v800 = vld [vmem:[%s9] sm:$0x1]
        %v802 = vperm.slane %v800, 0
        %v820 = vunpack.c.l.b16 %v784
        %v821 = vunpack.c.l.b16 %v785
        %v822 = vunpack.c.l.b16 %v786
        %v823 = vunpack.c.l.b16 %v787
        %v824 = vunpack.c.l.b16 %v788
        %v825 = vunpack.c.l.b16 %v789
        %v826 = vunpack.c.l.b16 %v790
        %v827 = vunpack.c.l.b16 %v791
        %v828 = vunpack.c.l.b16 %v792
        %v829 = vunpack.c.l.b16 %v793
        %v830 = vunpack.c.l.b16 %v794
        %v831 = vunpack.c.l.b16 %v795
        %v832 = vunpack.c.l.b16 %v796
        %v833 = vunpack.c.l.b16 %v797
        %v834 = vunpack.c.l.b16 %v798
        %v835 = vunpack.c.l.b16 %v799
        %v836 = vpack.c.b16 %v821, %v820
        %v837 = vpack.c.b16 %v823, %v822
        %v838 = vpack.c.b16 %v825, %v824
        %v839 = vpack.c.b16 %v827, %v826
        %v840 = vpack.c.b16 %v829, %v828
        %v841 = vpack.c.b16 %v831, %v830
        %v842 = vpack.c.b16 %v833, %v832
        %v843 = vpack.c.b16 %v835, %v834
        %852 = vmatpush.bf16.msra.mxu0 %v843
        %853 = vmatpush.bf16.msra.mxu0 %v842
        %854 = vmatpush.bf16.msra.mxu0 %v841
        %855 = vmatpush.bf16.msra.mxu0 %v840
        %856 = vmatpush.bf16.msra.mxu0 %v839
        %857 = vmatpush.bf16.msra.mxu0 %v838
        %858 = vmatpush.bf16.msra.mxu0 %v837
        %859 = vmatpush.bf16.msra.mxu0 %v836
        %860 = vmatmul.bf16.gmra.mxu0 %v783
        %v861 = vpop.f32.mrf.mxu0
        %v862 = vadd.f32 %v802, %v861
        %v863 = vpop.f32.mrf.mxu0
        %864 = vdwg.mxu0
        %v865 = vld [vmem:[%s510] sm:$0xff]
        %v866 = vadd.f32 %v865, %v862
        %867 = vst [vmem:[%s510] sm:$0xff] %v866
        %v868 = vld [vmem:[%s514] sm:$0xff]
        %v869 = vmul.f32 %v862, %v862
        %v870 = vadd.f32 %v868, %v869
        %871 = vst [vmem:[%s514] sm:$0xff] %v870
        %p872 = scmp.lt.s32.totalorder %s28, 0
        %s873 = scalar_select %p872, %s28, 0
        %s874 = smul.addr %s873, 8
        %s875 = scalar_lea.vmem %s10, %s874
        %p876 = scmp.lt.s32.totalorder %s28, 0
        %s877 = scalar_select %p876, %s28, 0
        %s878 = smul.addr %s877, 8
        %s879 = scalar_lea.vmem %s11, %s878
        // Predicated region
        $region69: #{_rse_forward.3} parent=59 // pred_check
          %p880 = pneg %p290
        $region70: #{_rse_forward.3} parent=59 // pred_check_branch
          %882 = sbr.rel (%p880) target = $region72
        $region71: #{_rse_forward.3} parent=59 // pred_region
          _
        $region72: #{_rse_forward.3} parent=59 // pred_fallthru
          _
        // Predicated region
        $region73: #{_rse_forward.3} parent=59 // pred_check
          %p883 = pneg %p316
        $region74: #{_rse_forward.3} parent=59 // pred_check_branch
          %885 = sbr.rel (%p883) target = $region76
        $region75: #{_rse_forward.3} parent=59 // pred_region
          _
        $region76: #{_rse_forward.3} parent=59 // pred_fallthru
          _
        // Predicated region
        $region77: #{_rse_forward.3} parent=59 // pred_check
          %p886 = pneg %p290
        $region78: #{_rse_forward.3} parent=59 // pred_check_branch
          %888 = sbr.rel (%p886) target = $region80
        $region79: #{_rse_forward.3} parent=59 // pred_region
          %p889 = scmp.lt.s32.totalorder %s28, 0
          %s890 = scalar_select %p889, %s28, 0
          %s891 = smul.addr %s890, 8
          %s892 = scalar_lea.vmem %s10, %s891
        $region80: #{_rse_forward.3} parent=59 // pred_fallthru
          _
        // Predicated region
        $region81: #{_rse_forward.3} parent=59 // pred_check
          %p893 = pneg %p316
        $region82: #{_rse_forward.3} parent=59 // pred_check_branch
          %895 = sbr.rel (%p893) target = $region84
        $region83: #{_rse_forward.3} parent=59 // pred_region
          %p896 = scmp.lt.s32.totalorder %s28, 0
          %s897 = scalar_select %p896, %s28, 0
          %s898 = smul.addr %s897, 8
          %s899 = scalar_lea.vmem %s11, %s898
        $region84: #{_rse_forward.3} parent=59 // pred_fallthru
          _
      $region60: #{_rse_forward.3} parent=5 // pred_fallthru
        _
      %p900 = scmp.le.s32.totalorder 2, %s19
      // Predicated region
      $region85: #{_rse_forward.3} parent=5 // pred_check
        %p901 = pneg %p900
      $region86: #{_rse_forward.3} parent=5 // pred_check_branch
        %903 = sbr.rel (%p901) target = $region88
      $region87: #{_rse_forward.3} parent=5 // pred_region
        %s904 = ssub.s32 %s19, 2
      $region88: #{_rse_forward.3} parent=5 // pred_fallthru
        _
    $region6: #{_rse_forward.3} parent=1 // loop_footer
      %s23 = sadd.s32 1, %s19
    $region7: #{_rse_forward.3} parent=1 // loop_footer_branch
      %18 = sbr.rel target = $region3
    $region8: #{_rse_forward.3} parent=1 // loop_exit
      _
    %905 = vsyncpa [#allocation3], 1
    %s906 = scalar_lea.sflag [#allocation3], 1
    %907 = vsyncpa %s906, 1

</llo_original>
